<compile_context>
chip_gen: v7x
topology: tpu7x:2x2x1
jax: 0.10.0
libtpu: 0.0.40
codegen_flags: <defaults>
</compile_context>

<pallas_src>
import functools

import jax
import jax.numpy as jnp
from jax.experimental import pallas as pl
from jax.experimental.pallas import tpu as pltpu

LANE = 128
SUBLANE = 8


def _round_up(n, m):
    return ((n + m - 1) // m) * m


def _elu(x):
    # ELU(alpha=1). Clamp the exp argument on the (discarded) positive branch so
    # no inf intermediates appear.
    return jnp.where(x > 0, x, jnp.exp(jnp.minimum(x, 0.0)) - 1.0)


def policy_net_kernel(n_layers, x_ref, *refs):
    """refs = (w0, b0, w1, b1, ..., w_{L-1}, b_{L-1}, out_ref).

    One batch tile per grid step. bf16 matmuls on the MXU with f32 accumulation,
    ELU/sigmoid on VPU/EUP in f32.
    """
    out_ref = refs[-1]
    wb = refs[:-1]

    h = x_ref[...].astype(jnp.float32)
    for i in range(n_layers):
        w = wb[2 * i][...]        # (in_pad, out_pad), bf16, lane-padded
        b = wb[2 * i + 1][...]    # (1, out_pad), f32
        h = jnp.dot(h.astype(jnp.bfloat16), w,
                    preferred_element_type=jnp.float32) + b
        if i < n_layers - 1:
            h = _elu(h)
    # Exact sigmoid on the single real output column (column 0). Cost is
    # negligible (tb exp + tb div per tile) and keeps the result within normal
    # f32/bf16 accuracy of the PyTorch forward.
    logit = h[:, :1]
    out_ref[...] = 1.0 / (1.0 + jnp.exp(-logit))


def policy_net_forward(x, weights, biases, *, batch_tile=2048):
    """x: (B, input_dim) f32; weights[i]: (in_i, out_i) f32; biases[i]: (1, out_i) f32."""
    B, input_dim = x.shape
    n_layers = len(weights)

    # --- pad hidden/output feature dims to 128 lanes (exact: zero-padded
    # columns give 0 pre-activations, ELU(0)=0; only column 0 of the last layer
    # is ever stored). Weights go to bf16 for full-rate MXU; biases stay f32. ---
    pw, pb = [], []
    for i, (w, b) in enumerate(zip(weights, biases)):
        in_d, out_d = w.shape
        in_pad = in_d if i == 0 else _round_up(in_d, LANE)
        out_pad = _round_up(out_d, LANE)
        wp = jnp.zeros((in_pad, out_pad), jnp.float32).at[:in_d, :out_d].set(w)
        bp = jnp.zeros((1, out_pad), jnp.float32).at[:, :out_d].set(b)
        pw.append(wp.astype(jnp.bfloat16))
        pb.append(bp)

    # --- batch tiling: 1-D grid over B, weights resident across iterations.
    # Tile pick bounds the padding to < one tile (avoids the old near-2x
    # blow-up for B just above a tile multiple). ---
    n_tiles_target = pl.cdiv(B, batch_tile)
    tb = _round_up(pl.cdiv(B, n_tiles_target), SUBLANE)
    b_pad = _round_up(B, tb)
    if b_pad != B:
        x = jnp.pad(x, ((0, b_pad - B), (0, 0)))
    nb = b_pad // tb

    flat_params, param_specs = [], []
    for w, b in zip(pw, pb):
        flat_params += [w, b]
        param_specs += [
            pl.BlockSpec(w.shape, lambda i: (0, 0)),   # VMEM-resident weight
            pl.BlockSpec(b.shape, lambda i: (0, 0)),   # VMEM-resident bias
        ]

    flops = 2 * b_pad * sum(w.shape[0] * w.shape[1] for w in pw)
    transcendentals = b_pad * (sum(w.shape[1] for w in pw[:-1]) + 1)
    bytes_accessed = (
        x.size * x.dtype.itemsize
        + sum(int(p.size) * p.dtype.itemsize for p in flat_params)
        + b_pad * 1 * 4                                # narrow (b_pad, 1) output
    )

    kernel = functools.partial(policy_net_kernel, n_layers)

    out = pl.pallas_call(
        kernel,
        out_shape=jax.ShapeDtypeStruct((b_pad, 1), jnp.float32),
        grid_spec=pltpu.PrefetchScalarGridSpec(
            num_scalar_prefetch=0,
            grid=(nb,),
            in_specs=[pl.BlockSpec((tb, input_dim), lambda i: (i, 0))] + param_specs,
            out_specs=pl.BlockSpec((tb, 1), lambda i: (i, 0)),
        ),
        compiler_params=pltpu.CompilerParams(
            dimension_semantics=("parallel",),          # v7x: shard batch over 2 TCs
            vmem_limit_bytes=32 * 1024 * 1024,           # fits v7x's 64 MiB VMEM
        ),
        cost_estimate=pl.CostEstimate(
            flops=flops,
            transcendentals=transcendentals,
            bytes_accessed=bytes_accessed,
        ),
    )(x, *flat_params)

    # Drop batch padding; output is already the real (B, 1) column.
    return out[:B, :]


def init_policy_net_params(key, input_dim, hidden_dim, n_layers):
    """Deterministic init mirroring nn.Linear.reset_parameters (U(-1/sqrt(fan_in), +))."""
    hidden = [hidden_dim] * (n_layers - 1)
    if n_layers == 1:
        dims = [(input_dim, 1)]
    else:
        dims = [(input_dim, hidden[0])]
        for i in range(1, n_layers - 1):
            dims.append((hidden[i - 1], hidden[i]))
        dims.append((hidden[n_layers - 2], 1))

    weights, biases = [], []
    for (fan_in, fan_out) in dims:
        key, kw, kb = jax.random.split(key, 3)
        bound = 1.0 / jnp.sqrt(jnp.float32(fan_in))
        # stored as (in_dim, out_dim) for the kernel (h @ W)
        w = jax.random.uniform(kw, (fan_in, fan_out), jnp.float32, -bound, bound)
        b = jax.random.uniform(kb, (1, fan_out), jnp.float32, -bound, bound)
        weights.append(w)
        biases.append(b)
    return weights, biases


def policy_net_reference(x, weights, biases):
    """Pure-JAX f32 reference of the PyTorch forward (unpadded params)."""
    h = x
    n = len(weights)
    for i in range(n):
        h = h @ weights[i] + biases[i]
        if i < n - 1:
            h = jnp.where(h > 0, h, jnp.exp(h) - 1.0)
    return 1.0 / (1.0 + jnp.exp(-h))


if __name__ == "__main__":
    # Small shapes consistent with the module: x is (batch, input_dim)
    batch = 8
    input_dim = 16
    hidden_dim = 32
    n_layers = 3

    key = jax.random.PRNGKey(0)
    key, kx = jax.random.split(key)
    x = jax.random.normal(kx, (batch, input_dim), jnp.float32)

    weights, biases = init_policy_net_params(key, input_dim, hidden_dim, n_layers)

    out = policy_net_forward(x, weights, biases)
    out = jax.block_until_ready(out)

    ref = policy_net_reference(x, weights, biases)
    assert out.shape == (batch, 1), out.shape
    # Kernel matmuls run in bf16 (f32 accumulation); expected deviation from the
    # f32 reference is ~1e-3 at these widths — 1e-2 tolerance gives ample margin.
    assert jnp.allclose(out, ref, atol=1e-2, rtol=1e-2), (out, ref)

    print("KERNEL_OK")
</pallas_src>

<mosaic_0001>
module attributes {stable_mosaic.version = 11 : i64} {
  func.func @policy_net_kernel(%arg0: i32, %arg1: memref<8x16xf32, #tpu.memory_space<vmem>>, %arg2: memref<16x128xbf16, #tpu.memory_space<vmem>>, %arg3: memref<1x128xf32, #tpu.memory_space<vmem>>, %arg4: memref<128x128xbf16, #tpu.memory_space<vmem>>, %arg5: memref<1x128xf32, #tpu.memory_space<vmem>>, %arg6: memref<128x128xbf16, #tpu.memory_space<vmem>>, %arg7: memref<1x128xf32, #tpu.memory_space<vmem>>, %arg8: memref<8x1xf32, #tpu.memory_space<vmem>>) attributes {dimension_semantics = [#tpu.dimension_semantics<parallel>], iteration_bounds = array<i64: 1>, scalar_prefetch = 0 : i64, scratch_operands = 0 : i64, tpu.core_type = #tpu.core_type<tc>, window_params = [{transform_indices = @transform_0, window_bounds = array<i64: 8, 16>}, {pipeline_mode = #tpu.pipeline_mode<synchronous>, transform_indices = @transform_1, window_bounds = array<i64: 16, 128>}, {pipeline_mode = #tpu.pipeline_mode<synchronous>, transform_indices = @transform_2, window_bounds = array<i64: 1, 128>}, {pipeline_mode = #tpu.pipeline_mode<synchronous>, transform_indices = @transform_3, window_bounds = array<i64: 128, 128>}, {pipeline_mode = #tpu.pipeline_mode<synchronous>, transform_indices = @transform_4, window_bounds = array<i64: 1, 128>}, {pipeline_mode = #tpu.pipeline_mode<synchronous>, transform_indices = @transform_5, window_bounds = array<i64: 128, 128>}, {pipeline_mode = #tpu.pipeline_mode<synchronous>, transform_indices = @transform_6, window_bounds = array<i64: 1, 128>}, {transform_indices = @transform_7, window_bounds = array<i64: 8, 1>}]} {
    %c0 = arith.constant 0 : index
    %c0_0 = arith.constant 0 : index
    %0 = vector.load %arg1[%c0, %c0_0] : memref<8x16xf32, #tpu.memory_space<vmem>>, vector<8x16xf32>
    %c0_1 = arith.constant 0 : index
    %c0_2 = arith.constant 0 : index
    %1 = vector.load %arg2[%c0_1, %c0_2] : memref<16x128xbf16, #tpu.memory_space<vmem>>, vector<16x128xbf16>
    %c0_3 = arith.constant 0 : index
    %c0_4 = arith.constant 0 : index
    %2 = vector.load %arg3[%c0_3, %c0_4] : memref<1x128xf32, #tpu.memory_space<vmem>>, vector<1x128xf32>
    %3 = arith.truncf %0 : vector<8x16xf32> to vector<8x16xbf16>
    %cst = arith.constant dense<0.000000e+00> : vector<8x128xf32>
    %4 = tpu.matmul %3, %1, %cst {dimension_numbers = #tpu.dot_dimension_numbers<[1], [0], [0], [1], [0, 0, 1, 1], [], []>} : vector<8x16xbf16>, vector<16x128xbf16>, vector<8x128xf32> -> vector<8x128xf32>
    %5 = vector.broadcast %2 : vector<1x128xf32> to vector<8x128xf32>
    %6 = arith.addf %4, %5 : vector<8x128xf32>
    %cst_5 = arith.constant 0.000000e+00 : f32
    %7 = vector.broadcast %cst_5 : f32 to vector<8x128xf32>
    %8 = arith.cmpf ogt, %6, %7 : vector<8x128xf32>
    %cst_6 = arith.constant 0.000000e+00 : f32
    %9 = vector.broadcast %cst_6 : f32 to vector<8x128xf32>
    %10 = arith.minimumf %6, %9 : vector<8x128xf32>
    %11 = math.exp %10 : vector<8x128xf32>
    %cst_7 = arith.constant 1.000000e+00 : f32
    %12 = vector.broadcast %cst_7 : f32 to vector<8x128xf32>
    %13 = arith.subf %11, %12 : vector<8x128xf32>
    %14 = arith.select %8, %6, %13 : vector<8x128xi1>, vector<8x128xf32>
    %c0_8 = arith.constant 0 : index
    %c0_9 = arith.constant 0 : index
    %15 = vector.load %arg4[%c0_8, %c0_9] : memref<128x128xbf16, #tpu.memory_space<vmem>>, vector<128x128xbf16>
    %c0_10 = arith.constant 0 : index
    %c0_11 = arith.constant 0 : index
    %16 = vector.load %arg5[%c0_10, %c0_11] : memref<1x128xf32, #tpu.memory_space<vmem>>, vector<1x128xf32>
    %17 = arith.truncf %14 : vector<8x128xf32> to vector<8x128xbf16>
    %cst_12 = arith.constant dense<0.000000e+00> : vector<8x128xf32>
    %18 = tpu.matmul %17, %15, %cst_12 {dimension_numbers = #tpu.dot_dimension_numbers<[1], [0], [0], [1], [0, 0, 1, 1], [], []>} : vector<8x128xbf16>, vector<128x128xbf16>, vector<8x128xf32> -> vector<8x128xf32>
    %19 = vector.broadcast %16 : vector<1x128xf32> to vector<8x128xf32>
    %20 = arith.addf %18, %19 : vector<8x128xf32>
    %cst_13 = arith.constant 0.000000e+00 : f32
    %21 = vector.broadcast %cst_13 : f32 to vector<8x128xf32>
    %22 = arith.cmpf ogt, %20, %21 : vector<8x128xf32>
    %cst_14 = arith.constant 0.000000e+00 : f32
    %23 = vector.broadcast %cst_14 : f32 to vector<8x128xf32>
    %24 = arith.minimumf %20, %23 : vector<8x128xf32>
    %25 = math.exp %24 : vector<8x128xf32>
    %cst_15 = arith.constant 1.000000e+00 : f32
    %26 = vector.broadcast %cst_15 : f32 to vector<8x128xf32>
    %27 = arith.subf %25, %26 : vector<8x128xf32>
    %28 = arith.select %22, %20, %27 : vector<8x128xi1>, vector<8x128xf32>
    %c0_16 = arith.constant 0 : index
    %c0_17 = arith.constant 0 : index
    %29 = vector.load %arg6[%c0_16, %c0_17] : memref<128x128xbf16, #tpu.memory_space<vmem>>, vector<128x128xbf16>
    %c0_18 = arith.constant 0 : index
    %c0_19 = arith.constant 0 : index
    %30 = vector.load %arg7[%c0_18, %c0_19] : memref<1x128xf32, #tpu.memory_space<vmem>>, vector<1x128xf32>
    %31 = arith.truncf %28 : vector<8x128xf32> to vector<8x128xbf16>
    %cst_20 = arith.constant dense<0.000000e+00> : vector<8x128xf32>
    %32 = tpu.matmul %31, %29, %cst_20 {dimension_numbers = #tpu.dot_dimension_numbers<[1], [0], [0], [1], [0, 0, 1, 1], [], []>} : vector<8x128xbf16>, vector<128x128xbf16>, vector<8x128xf32> -> vector<8x128xf32>
    %33 = vector.broadcast %30 : vector<1x128xf32> to vector<8x128xf32>
    %34 = arith.addf %32, %33 : vector<8x128xf32>
    %35 = vector.extract_strided_slice %34 {offsets = [0, 0], sizes = [8, 1], strides = [1, 1]} : vector<8x128xf32> to vector<8x1xf32>
    %cst_21 = arith.constant 0.000000e+00 : f32
    %36 = vector.broadcast %cst_21 : f32 to vector<8x1xf32>
    %37 = arith.subf %36, %35 : vector<8x1xf32>
    %38 = math.exp %37 : vector<8x1xf32>
    %cst_22 = arith.constant 1.000000e+00 : f32
    %39 = vector.broadcast %cst_22 : f32 to vector<8x1xf32>
    %40 = arith.addf %39, %38 : vector<8x1xf32>
    %cst_23 = arith.constant 1.000000e+00 : f32
    %41 = vector.broadcast %cst_23 : f32 to vector<8x1xf32>
    %42 = arith.divf %41, %40 : vector<8x1xf32>
    %c0_24 = arith.constant 0 : index
    %c0_25 = arith.constant 0 : index
    %43 = vector.load %arg8[%c0_24, %c0_25] : memref<8x1xf32, #tpu.memory_space<vmem>>, vector<8x1xf32>
    tpu.vector_store %arg8[%c0_24, %c0_25], %42 {strides = array<i32>} : memref<8x1xf32, #tpu.memory_space<vmem>>, vector<8x1xf32>,
    return
  }
  func.func @transform_0(%arg0: i32) -> (i32, i32) {
    %c0_i32 = arith.constant 0 : i32
    %c0_i32_0 = arith.constant 0 : i32
    return %arg0, %c0_i32 : i32, i32
  }
  func.func @transform_1(%arg0: i32) -> (i32, i32) {
    %c0_i32 = arith.constant 0 : i32
    %c0_i32_0 = arith.constant 0 : i32
    %c0_i32_1 = arith.constant 0 : i32
    return %c0_i32, %c0_i32_0 : i32, i32
  }
  func.func @transform_2(%arg0: i32) -> (i32, i32) {
    %c0_i32 = arith.constant 0 : i32
    %c0_i32_0 = arith.constant 0 : i32
    %c0_i32_1 = arith.constant 0 : i32
    return %c0_i32, %c0_i32_0 : i32, i32
  }
  func.func @transform_3(%arg0: i32) -> (i32, i32) {
    %c0_i32 = arith.constant 0 : i32
    %c0_i32_0 = arith.constant 0 : i32
    %c0_i32_1 = arith.constant 0 : i32
    return %c0_i32, %c0_i32_0 : i32, i32
  }
  func.func @transform_4(%arg0: i32) -> (i32, i32) {
    %c0_i32 = arith.constant 0 : i32
    %c0_i32_0 = arith.constant 0 : i32
    %c0_i32_1 = arith.constant 0 : i32
    return %c0_i32, %c0_i32_0 : i32, i32
  }
  func.func @transform_5(%arg0: i32) -> (i32, i32) {
    %c0_i32 = arith.constant 0 : i32
    %c0_i32_0 = arith.constant 0 : i32
    %c0_i32_1 = arith.constant 0 : i32
    return %c0_i32, %c0_i32_0 : i32, i32
  }
  func.func @transform_6(%arg0: i32) -> (i32, i32) {
    %c0_i32 = arith.constant 0 : i32
    %c0_i32_0 = arith.constant 0 : i32
    %c0_i32_1 = arith.constant 0 : i32
    return %c0_i32, %c0_i32_0 : i32, i32
  }
  func.func @transform_7(%arg0: i32) -> (i32, i32) {
    %c0_i32 = arith.constant 0 : i32
    %c0_i32_0 = arith.constant 0 : i32
    return %arg0, %c0_i32 : i32, i32
  }
}

</mosaic_0001>

<llo_original>
// kernel: tpu_custom_call.1
$region0: #{tpu_custom_call.1}
  #allocation0 [shape = 'u32[]', space=smem, size = 0x4, offset = 0x4, fixed_abs, tag = 'smem constant byte address 0x4 - core index']
  #allocation1 [shape = 'u32[144,128]{1,0:T(1,128)}', space=vmem, size = 0x12000, scoped, tag = 'internal scratch']
  %s0 = inlined_call_operand.hbm [shape: f32[8,16], index: 0, kind: input, shape index: {}]
  %s1 = inlined_call_operand.hbm [shape: bf16[16,128], index: 1, kind: input, shape index: {}]
  %s2 = inlined_call_operand.vmem [shape: f32[1,128], index: 2, kind: input, shape index: {}]
  %s3 = inlined_call_operand.hbm [shape: bf16[128,128], index: 3, kind: input, shape index: {}]
  %s4 = inlined_call_operand.vmem [shape: f32[1,128], index: 4, kind: input, shape index: {}]
  %s5 = inlined_call_operand.hbm [shape: bf16[128,128], index: 5, kind: input, shape index: {}]
  %s6 = inlined_call_operand.vmem [shape: f32[1,128], index: 6, kind: input, shape index: {}]
  %s7 = inlined_call_operand.vmem [shape: f32[8,1], index: 7, kind: output, shape index: {}]
  %s8 = sld [smem:[#allocation0]]
  $region54: #{tpu_custom_call.1} parent=0
    _
  %s10 = ssub.s32 1, %s8
  %s11 = scalar_select 0, %s10, %s8
  $region1: #{tpu_custom_call.1} parent=0
    #allocation2 [shape = 'u8[4096]{0}', space=vmem, size = 0x1000, scoped, tag = 'input window, operand 0, single buffered']
    #allocation3 [shape = 's32[1]{0}', space=sflag, size = 0x4, scoped, tag = 'scoped memory for tpu_custom_call.1']
    #allocation4 [shape = 'u8[4096]{0}', space=vmem, size = 0x1000, scoped, tag = 'input window, operand 1, single buffered']
    #allocation5 [shape = 's32[1]{0}', space=sflag, size = 0x4, scoped, tag = 'scoped memory for tpu_custom_call.1']
    #allocation6 [shape = 'u8[32768]{0}', space=vmem, size = 0x8000, scoped, tag = 'input window, operand 3, single buffered']
    #allocation7 [shape = 'u8[32768]{0}', space=vmem, size = 0x8000, scoped, tag = 'input window, operand 5, single buffered']
    #allocation8 [shape = 's32[1]{0}', space=sflag, size = 0x4, scoped, tag = 'scoped memory for tpu_custom_call.1']
    %12 = vsyncpa [#allocation3], 0
    %13 = vsyncpa [#allocation5], 0
    %14 = vsyncpa [#allocation8], 0
    // Predicated region
    $region2: #{tpu_custom_call.1} parent=1 // pred_check
      _
    $region3: #{tpu_custom_call.1} parent=1 // pred_check_branch
      %16 = sbr.rel (0) target = $region5
    $region4: #{tpu_custom_call.1} parent=1 // pred_region
      %s18 = ssub.s32 128, 128
      %19 = vsyncadd [#allocation3], %s18
      %s21 = sshll.u32 [#allocation2], 4
      %s22 = int_to_ptr.vmem [resolvable:$true] %s21
      %24 = dma.hbm_to_vmem [thread:$0]  %s0, 128, %s22, [#allocation3]
    $region5: #{tpu_custom_call.1} parent=1 // pred_fallthru
      _
    // Predicated region
    $region6: #{tpu_custom_call.1} parent=1 // pred_check
      _
    $region7: #{tpu_custom_call.1} parent=1 // pred_check_branch
      %26 = sbr.rel (0) target = $region9
    $region8: #{tpu_custom_call.1} parent=1 // pred_region
      %s28 = ssub.s32 128, 128
      %29 = vsyncadd [#allocation5], %s28
      %s30 = sshll.u32 [#allocation4], 4
      %s31 = int_to_ptr.vmem [resolvable:$true] %s30
      %36 = dma.hbm_to_vmem [thread:$0]  %s1, 128, %s31, [#allocation5], 64, 64, 4
    $region9: #{tpu_custom_call.1} parent=1 // pred_fallthru
      _
    // Predicated region
    $region10: #{tpu_custom_call.1} parent=1 // pred_check
      _
    $region11: #{tpu_custom_call.1} parent=1 // pred_check_branch
      %38 = sbr.rel (0) target = $region13
    $region12: #{tpu_custom_call.1} parent=1 // pred_region
      _
    $region13: #{tpu_custom_call.1} parent=1 // pred_fallthru
      _
    // Predicated region
    $region14: #{tpu_custom_call.1} parent=1 // pred_check
      _
    $region15: #{tpu_custom_call.1} parent=1 // pred_check_branch
      %40 = sbr.rel (0) target = $region17
    $region16: #{tpu_custom_call.1} parent=1 // pred_region
      %s42 = ssub.s32 1024, 1024
      %43 = vsyncadd [#allocation5], %s42
      %s44 = sshll.u32 [#allocation6], 4
      %s45 = int_to_ptr.vmem [resolvable:$true] %s44
      %50 = dma.hbm_to_vmem [thread:$0]  %s3, 1024, %s45, [#allocation5], 64, 64, 4
    $region17: #{tpu_custom_call.1} parent=1 // pred_fallthru
      _
    // Predicated region
    $region18: #{tpu_custom_call.1} parent=1 // pred_check
      _
    $region19: #{tpu_custom_call.1} parent=1 // pred_check_branch
      %52 = sbr.rel (0) target = $region21
    $region20: #{tpu_custom_call.1} parent=1 // pred_region
      _
    $region21: #{tpu_custom_call.1} parent=1 // pred_fallthru
      _
    // Predicated region
    $region22: #{tpu_custom_call.1} parent=1 // pred_check
      _
    $region23: #{tpu_custom_call.1} parent=1 // pred_check_branch
      %54 = sbr.rel (0) target = $region25
    $region24: #{tpu_custom_call.1} parent=1 // pred_region
      %s56 = ssub.s32 1024, 1024
      %57 = vsyncadd [#allocation8], %s56
      %s58 = sshll.u32 [#allocation7], 4
      %s59 = int_to_ptr.vmem [resolvable:$true] %s58
      %64 = dma.hbm_to_vmem [thread:$0]  %s5, 1024, %s59, [#allocation8], 64, 64, 4
    $region25: #{tpu_custom_call.1} parent=1 // pred_fallthru
      _
    // Predicated region
    $region26: #{tpu_custom_call.1} parent=1 // pred_check
      _
    $region27: #{tpu_custom_call.1} parent=1 // pred_check_branch
      %66 = sbr.rel (0) target = $region29
    $region28: #{tpu_custom_call.1} parent=1 // pred_region
      _
    $region29: #{tpu_custom_call.1} parent=1 // pred_fallthru
      _
    // Predicated region
    $region30: #{tpu_custom_call.1} parent=1 // pred_check
      _
    $region31: #{tpu_custom_call.1} parent=1 // pred_check_branch
      %68 = sbr.rel (0) target = $region33
    $region32: #{tpu_custom_call.1} parent=1 // pred_region
      %69 = dma.done [#allocation3], 128
    $region33: #{tpu_custom_call.1} parent=1 // pred_fallthru
      _
    // Predicated region
    $region34: #{tpu_custom_call.1} parent=1 // pred_check
      _
    $region35: #{tpu_custom_call.1} parent=1 // pred_check_branch
      %71 = sbr.rel (0) target = $region37
    $region36: #{tpu_custom_call.1} parent=1 // pred_region
      %72 = dma.done [#allocation5], 128
    $region37: #{tpu_custom_call.1} parent=1 // pred_fallthru
      _
    // Predicated region
    $region38: #{tpu_custom_call.1} parent=1 // pred_check
      _
    $region39: #{tpu_custom_call.1} parent=1 // pred_check_branch
      %74 = sbr.rel (0) target = $region41
    $region40: #{tpu_custom_call.1} parent=1 // pred_region
      %75 = dma.done [#allocation5], 1024
    $region41: #{tpu_custom_call.1} parent=1 // pred_fallthru
      _
    // Predicated region
    $region42: #{tpu_custom_call.1} parent=1 // pred_check
      _
    $region43: #{tpu_custom_call.1} parent=1 // pred_check_branch
      %77 = sbr.rel (0) target = $region45
    $region44: #{tpu_custom_call.1} parent=1 // pred_region
      %78 = dma.done [#allocation8], 1024
    $region45: #{tpu_custom_call.1} parent=1 // pred_fallthru
      _
    %v80 = vld [vmem:[#allocation2] sm:$0xff]
    %v81 = vld [vmem:[#allocation4] sm:$0xf]
    %v82 = vld [vmem:[#allocation4 + $0x4] sm:$0xf]
    %v83 = vld [vmem:[%s2] sm:$0x1]
    %v84 = vpack.c.bf16 %v80, %v80
    %v86 = vlaneseq
    %v87 = vshrl.u32 %v86, 7
    %v88 = vsub.s32 0, %v87
    %v89 = vrot.slane %v83, %v88
    %v93 = vunpack.c.l.b16 %v81
    %v94 = vunpack.c.l.b16 %v82
    %v95 = vpack.c.b16 %v94, %v93
    %vm97 = vcmask 130048
    %v99 = vsel %vm97, %v84, 0
    %101 = vmatprep.subr.bf16.mxu0 0
    %102 = vmatpush1.bf16.msra.mxu0 %v95
    %103 = vmatprep.subr.bf16.mxu0 0
    %104 = vmatpush1.bf16.msra.mxu0 0
    %105 = vmatprep.subr.bf16.mxu0 0
    %106 = vmatpush1.bf16.msra.mxu0 0
    %107 = vmatprep.subr.bf16.mxu0 0
    %108 = vmatpush1.bf16.msra.mxu0 0
    %109 = vmatprep.subr.bf16.mxu0 0
    %110 = vmatpush1.bf16.msra.mxu0 0
    %111 = vmatprep.subr.bf16.mxu0 0
    %112 = vmatpush1.bf16.msra.mxu0 0
    %113 = vmatprep.subr.bf16.mxu0 0
    %114 = vmatpush1.bf16.msra.mxu0 0
    %115 = vmatprep.subr.bf16.mxu0 0
    %116 = vmatpush1.bf16.msra.mxu0 0
    %117 = vmatprep.subr.bf16.mxu0 0
    %118 = vmatpush1.bf16.msra.mxu0 0
    %119 = vmatprep.subr.bf16.mxu0 0
    %120 = vmatpush1.bf16.msra.mxu0 0
    %121 = vmatprep.subr.bf16.mxu0 0
    %122 = vmatpush1.bf16.msra.mxu0 0
    %123 = vmatprep.subr.bf16.mxu0 0
    %124 = vmatpush1.bf16.msra.mxu0 0
    %125 = vmatprep.subr.bf16.mxu0 0
    %126 = vmatpush1.bf16.msra.mxu0 0
    %127 = vmatprep.subr.bf16.mxu0 0
    %128 = vmatpush1.bf16.msra.mxu0 0
    %129 = vmatprep.subr.bf16.mxu0 0
    %130 = vmatpush1.bf16.msra.mxu0 0
    %131 = vmatprep.subr.bf16.mxu0 0
    %132 = vmatpush1.bf16.msra.mxu0 0
    %133 = vmatprep.mubr.bf16.mxu0 0
    %134 = vmatmul.mubr.bf16.gmra.mrb[0].mxu0 %v99
    %v135 = vpop.f32.mrb[0].mxu0
    %v136 = vadd.f32 %v89, %v135
    %v137 = vpop.f32.mrb[0].mxu0
    %v138 = vpop.f32.mrb[0].mxu0
    %v139 = vpop.f32.mrb[0].mxu0
    %140 = vdwg.mxu0
    %vm141 = vcmp.gt.f32.partialorder %v136, 0.0
    %v142 = vmin.f32 %v136, 0.0
    %v143 = vmul.f32 %v142, 1.442695
    %v144 = vpow.pop %v143
    %v145 = vsub.f32 %v144, 1.0
    %v146 = vsel %vm141, %v136, %v145
    %v147 = vld [vmem:[#allocation6] sm:$0xf]
    %v148 = vld [vmem:[#allocation6 + $0x4] sm:$0xf]
    %v149 = vld [vmem:[#allocation6 + $0x8] sm:$0xf]
    %v150 = vld [vmem:[#allocation6 + $0xc] sm:$0xf]
    %v151 = vld [vmem:[#allocation6 + $0x10] sm:$0xf]
    %v152 = vld [vmem:[#allocation6 + $0x14] sm:$0xf]
    %v153 = vld [vmem:[#allocation6 + $0x18] sm:$0xf]
    %v154 = vld [vmem:[#allocation6 + $0x1c] sm:$0xf]
    %v155 = vld [vmem:[#allocation6 + $0x20] sm:$0xf]
    %v156 = vld [vmem:[#allocation6 + $0x24] sm:$0xf]
    %v157 = vld [vmem:[#allocation6 + $0x28] sm:$0xf]
    %v158 = vld [vmem:[#allocation6 + $0x2c] sm:$0xf]
    %v159 = vld [vmem:[#allocation6 + $0x30] sm:$0xf]
    %v160 = vld [vmem:[#allocation6 + $0x34] sm:$0xf]
    %v161 = vld [vmem:[#allocation6 + $0x38] sm:$0xf]
    %v162 = vld [vmem:[#allocation6 + $0x3c] sm:$0xf]
    %v163 = vld [vmem:[%s4] sm:$0x1]
    %v164 = vpack.c.bf16 %v146, %v146
    %v166 = vlaneseq
    %v167 = vshrl.u32 %v166, 7
    %v168 = vsub.s32 0, %v167
    %v169 = vrot.slane %v163, %v168
    %v187 = vunpack.c.l.b16 %v147
    %v188 = vunpack.c.l.b16 %v148
    %v189 = vunpack.c.l.b16 %v149
    %v190 = vunpack.c.l.b16 %v150
    %v191 = vunpack.c.l.b16 %v151
    %v192 = vunpack.c.l.b16 %v152
    %v193 = vunpack.c.l.b16 %v153
    %v194 = vunpack.c.l.b16 %v154
    %v195 = vunpack.c.l.b16 %v155
    %v196 = vunpack.c.l.b16 %v156
    %v197 = vunpack.c.l.b16 %v157
    %v198 = vunpack.c.l.b16 %v158
    %v199 = vunpack.c.l.b16 %v159
    %v200 = vunpack.c.l.b16 %v160
    %v201 = vunpack.c.l.b16 %v161
    %v202 = vunpack.c.l.b16 %v162
    %v203 = vpack.c.b16 %v188, %v187
    %v204 = vpack.c.b16 %v190, %v189
    %v205 = vpack.c.b16 %v192, %v191
    %v206 = vpack.c.b16 %v194, %v193
    %v207 = vpack.c.b16 %v196, %v195
    %v208 = vpack.c.b16 %v198, %v197
    %v209 = vpack.c.b16 %v200, %v199
    %v210 = vpack.c.b16 %v202, %v201
    %219 = vmatprep.subr.bf16.mxu0 0
    %220 = vmatpush1.bf16.msra.mxu0 %v203
    %221 = vmatprep.subr.bf16.mxu0 0
    %222 = vmatpush1.bf16.msra.mxu0 %v204
    %223 = vmatprep.subr.bf16.mxu0 0
    %224 = vmatpush1.bf16.msra.mxu0 %v205
    %225 = vmatprep.subr.bf16.mxu0 0
    %226 = vmatpush1.bf16.msra.mxu0 %v206
    %227 = vmatprep.subr.bf16.mxu0 0
    %228 = vmatpush1.bf16.msra.mxu0 %v207
    %229 = vmatprep.subr.bf16.mxu0 0
    %230 = vmatpush1.bf16.msra.mxu0 %v208
    %231 = vmatprep.subr.bf16.mxu0 0
    %232 = vmatpush1.bf16.msra.mxu0 %v209
    %233 = vmatprep.subr.bf16.mxu0 0
    %234 = vmatpush1.bf16.msra.mxu0 %v210
    %235 = vmatprep.subr.bf16.mxu0 0
    %236 = vmatpush1.bf16.msra.mxu0 0
    %237 = vmatprep.subr.bf16.mxu0 0
    %238 = vmatpush1.bf16.msra.mxu0 0
    %239 = vmatprep.subr.bf16.mxu0 0
    %240 = vmatpush1.bf16.msra.mxu0 0
    %241 = vmatprep.subr.bf16.mxu0 0
    %242 = vmatpush1.bf16.msra.mxu0 0
    %243 = vmatprep.subr.bf16.mxu0 0
    %244 = vmatpush1.bf16.msra.mxu0 0
    %245 = vmatprep.subr.bf16.mxu0 0
    %246 = vmatpush1.bf16.msra.mxu0 0
    %247 = vmatprep.subr.bf16.mxu0 0
    %248 = vmatpush1.bf16.msra.mxu0 0
    %249 = vmatprep.subr.bf16.mxu0 0
    %250 = vmatpush1.bf16.msra.mxu0 0
    %251 = vmatprep.mubr.bf16.mxu0 0
    %252 = vmatmul.mubr.bf16.gmra.mrb[0].mxu0 %v164
    %v253 = vpop.f32.mrb[0].mxu0
    %v254 = vadd.f32 %v169, %v253
    %v255 = vpop.f32.mrb[0].mxu0
    %v256 = vpop.f32.mrb[0].mxu0
    %v257 = vpop.f32.mrb[0].mxu0
    %258 = vdwg.mxu0
    %vm259 = vcmp.gt.f32.partialorder %v254, 0.0
    %v260 = vmin.f32 %v254, 0.0
    %v261 = vmul.f32 %v260, 1.442695
    %v262 = vpow.pop %v261
    %v263 = vsub.f32 %v262, 1.0
    %v264 = vsel %vm259, %v254, %v263
    %v265 = vld [vmem:[#allocation7] sm:$0xf]
    %v266 = vld [vmem:[#allocation7 + $0x4] sm:$0xf]
    %v267 = vld [vmem:[#allocation7 + $0x8] sm:$0xf]
    %v268 = vld [vmem:[#allocation7 + $0xc] sm:$0xf]
    %v269 = vld [vmem:[#allocation7 + $0x10] sm:$0xf]
    %v270 = vld [vmem:[#allocation7 + $0x14] sm:$0xf]
    %v271 = vld [vmem:[#allocation7 + $0x18] sm:$0xf]
    %v272 = vld [vmem:[#allocation7 + $0x1c] sm:$0xf]
    %v273 = vld [vmem:[#allocation7 + $0x20] sm:$0xf]
    %v274 = vld [vmem:[#allocation7 + $0x24] sm:$0xf]
    %v275 = vld [vmem:[#allocation7 + $0x28] sm:$0xf]
    %v276 = vld [vmem:[#allocation7 + $0x2c] sm:$0xf]
    %v277 = vld [vmem:[#allocation7 + $0x30] sm:$0xf]
    %v278 = vld [vmem:[#allocation7 + $0x34] sm:$0xf]
    %v279 = vld [vmem:[#allocation7 + $0x38] sm:$0xf]
    %v280 = vld [vmem:[#allocation7 + $0x3c] sm:$0xf]
    %v281 = vld [vmem:[%s6] sm:$0x1]
    %v282 = vpack.c.bf16 %v264, %v264
    %v284 = vlaneseq
    %v285 = vshrl.u32 %v284, 7
    %v286 = vsub.s32 0, %v285
    %v287 = vrot.slane %v281, %v286
    %v305 = vunpack.c.l.b16 %v265
    %v306 = vunpack.c.l.b16 %v266
    %v307 = vunpack.c.l.b16 %v267
    %v308 = vunpack.c.l.b16 %v268
    %v309 = vunpack.c.l.b16 %v269
    %v310 = vunpack.c.l.b16 %v270
    %v311 = vunpack.c.l.b16 %v271
    %v312 = vunpack.c.l.b16 %v272
    %v313 = vunpack.c.l.b16 %v273
    %v314 = vunpack.c.l.b16 %v274
    %v315 = vunpack.c.l.b16 %v275
    %v316 = vunpack.c.l.b16 %v276
    %v317 = vunpack.c.l.b16 %v277
    %v318 = vunpack.c.l.b16 %v278
    %v319 = vunpack.c.l.b16 %v279
    %v320 = vunpack.c.l.b16 %v280
    %v321 = vpack.c.b16 %v306, %v305
    %v322 = vpack.c.b16 %v308, %v307
    %v323 = vpack.c.b16 %v310, %v309
    %v324 = vpack.c.b16 %v312, %v311
    %v325 = vpack.c.b16 %v314, %v313
    %v326 = vpack.c.b16 %v316, %v315
    %v327 = vpack.c.b16 %v318, %v317
    %v328 = vpack.c.b16 %v320, %v319
    %337 = vmatprep.subr.bf16.mxu0 0
    %338 = vmatpush1.bf16.msra.mxu0 %v321
    %339 = vmatprep.subr.bf16.mxu0 0
    %340 = vmatpush1.bf16.msra.mxu0 %v322
    %341 = vmatprep.subr.bf16.mxu0 0
    %342 = vmatpush1.bf16.msra.mxu0 %v323
    %343 = vmatprep.subr.bf16.mxu0 0
    %344 = vmatpush1.bf16.msra.mxu0 %v324
    %345 = vmatprep.subr.bf16.mxu0 0
    %346 = vmatpush1.bf16.msra.mxu0 %v325
    %347 = vmatprep.subr.bf16.mxu0 0
    %348 = vmatpush1.bf16.msra.mxu0 %v326
    %349 = vmatprep.subr.bf16.mxu0 0
    %350 = vmatpush1.bf16.msra.mxu0 %v327
    %351 = vmatprep.subr.bf16.mxu0 0
    %352 = vmatpush1.bf16.msra.mxu0 %v328
    %353 = vmatprep.subr.bf16.mxu0 0
    %354 = vmatpush1.bf16.msra.mxu0 0
    %355 = vmatprep.subr.bf16.mxu0 0
    %356 = vmatpush1.bf16.msra.mxu0 0
    %357 = vmatprep.subr.bf16.mxu0 0
    %358 = vmatpush1.bf16.msra.mxu0 0
    %359 = vmatprep.subr.bf16.mxu0 0
    %360 = vmatpush1.bf16.msra.mxu0 0
    %361 = vmatprep.subr.bf16.mxu0 0
    %362 = vmatpush1.bf16.msra.mxu0 0
    %363 = vmatprep.subr.bf16.mxu0 0
    %364 = vmatpush1.bf16.msra.mxu0 0
    %365 = vmatprep.subr.bf16.mxu0 0
    %366 = vmatpush1.bf16.msra.mxu0 0
    %367 = vmatprep.subr.bf16.mxu0 0
    %368 = vmatpush1.bf16.msra.mxu0 0
    %369 = vmatprep.mubr.bf16.mxu0 0
    %370 = vmatmul.mubr.bf16.gmra.mrb[0].mxu0 %v282
    %v371 = vpop.f32.mrb[0].mxu0
    %v372 = vadd.f32 %v287, %v371
    %v373 = vpop.f32.mrb[0].mxu0
    %v374 = vpop.f32.mrb[0].mxu0
    %v375 = vpop.f32.mrb[0].mxu0
    %376 = vdwg.mxu0
    %v377 = vsub.f32 0.0, %v372
    %v378 = vmul.f32 %v377, 1.442695
    %v379 = vpow.pop %v378
    %v380 = vadd.f32 %v379, 1.0
    %v381 = vrcp.pop %v380
    %v382 = vmul.f32 1.0, %v381
    %vm383 = vcmask 7168
    %384 = vst.msk [vmem:[%s7] sm:$0xff] %vm383, %v382
    // Predicated region
    $region46: #{tpu_custom_call.1} parent=1 // pred_check
      _
    $region47: #{tpu_custom_call.1} parent=1 // pred_check_branch
      %386 = sbr.rel (0) target = $region49
    $region48: #{tpu_custom_call.1} parent=1 // pred_region
      _
    $region49: #{tpu_custom_call.1} parent=1 // pred_fallthru
      _
    // Predicated region
    $region50: #{tpu_custom_call.1} parent=1 // pred_check
      _
    $region51: #{tpu_custom_call.1} parent=1 // pred_check_branch
      %388 = sbr.rel (0) target = $region53
    $region52: #{tpu_custom_call.1} parent=1 // pred_region
      _
    $region53: #{tpu_custom_call.1} parent=1 // pred_fallthru
      _
    %389 = vsyncpa [#allocation3], 1
    %390 = vsyncpa [#allocation5], 1
    %391 = vsyncpa [#allocation8], 1

</llo_original>
